<compile_context>
chip_gen: v5e
topology: v5e:2x2
jax: 0.10.0
libtpu: 0.0.40
codegen_flags: <defaults>
</compile_context>

<pallas_src>
import functools

import jax
import jax.numpy as jnp
from jax import lax
from jax.experimental import pallas as pl
from jax.experimental.pallas import tpu as pltpu


def mhsa1d_kernel(x_ref, w_ref, b_ref, rel_ref, o_ref, qkv_ref, *,
                  heads, head_dim, batch_tile, length, mxu_dtype):
    C = heads * head_dim
    L = length

    # ---- Fused QKV projection: one lane-dense (3C, C) x (C, Bt*L) MXU matmul,
    # f32 accumulation, one fused bias add.  x/w arrive already in mxu_dtype.
    qkv = jnp.dot(w_ref[...], x_ref[...], preferred_element_type=jnp.float32)
    qkv_ref[...] = qkv + b_ref[...]                  # (3C, Bt*L) f32 scratch

    # TODO(synk): for very large L, tile the (L, L) scores with a flash-style
    # online softmax (trigger at roughly half the L threshold on v7x's 64 MiB).
    # TODO(synk): on v6e/v7x a bf16 exp path (cast energy-m to bf16 before
    # jnp.exp, keep f32 row-sum/reciprocal) ~doubles EUP throughput at large L.

    for b in range(batch_tile):                      # static -> static lane slices
        lane = pl.ds(b * L, L)

        def head_body(h, carry):
            sq = pl.multiple_of(h * head_dim, head_dim)
            sk = pl.multiple_of(C + h * head_dim, head_dim)
            sv = pl.multiple_of(2 * C + h * head_dim, head_dim)

            q = qkv_ref[pl.ds(sq, head_dim), lane]                   # (d, L) f32
            k = qkv_ref[pl.ds(sk, head_dim), lane]
            v = qkv_ref[pl.ds(sv, head_dim), lane]
            r = rel_ref[pl.ds(sq, head_dim), :]                      # (d, L) f32
            if mxu_dtype is not None:
                q = q.astype(mxu_dtype)
                k = k.astype(mxu_dtype)
                v = v.astype(mxu_dtype)
                r = r.astype(mxu_dtype)

            # energy = q^T k + rel^T q, fused into one MXU matmul by stacking
            # along the contraction axis: (2d, L) contract (2d, L) -> (L, L).
            lhs = jnp.concatenate([q, r], axis=0)
            rhs = jnp.concatenate([k, q], axis=0)
            energy = lax.dot_general(lhs, rhs, (((0,), (0,)), ((), ())),
                                     preferred_element_type=jnp.float32)

            # Numerically-stable softmax over the last dim, entirely in f32;
            # denominator reciprocal runs on the otherwise-idle EUP slot.
            m = jnp.max(energy, axis=-1, keepdims=True)
            p = jnp.exp(energy - m)
            attn = p * pl.reciprocal(jnp.sum(p, axis=-1, keepdims=True),
                                     approx=True)
            if mxu_dtype is not None:
                attn = attn.astype(mxu_dtype)

            # out[d, i] = sum_j v[d, j] * attn[i, j]   (== v @ attn^T)
            out_h = lax.dot_general(v, attn, (((1,), (1,)), ((), ())),
                                    preferred_element_type=jnp.float32)
            o_ref[pl.ds(sq, head_dim), lane] = out_h.astype(o_ref.dtype)
            return carry

        lax.fori_loop(0, heads, head_body, 0)


def _choose_batch_tile(B, L, lane_target=256, max_tile=32):
    """Smallest divisor of B whose lane extent (bt*L) reaches lane_target,
    else the largest divisor <= max_tile (keeps blocks lane-dense for small L
    while leaving several grid steps for megacore when B is large)."""
    best = 1
    for bt in range(1, min(B, max_tile) + 1):
        if B % bt == 0:
            best = bt
            if bt * L >= lane_target:
                break
    return best


def _round_up(n, m):
    return (n + m - 1) // m * m


def _vmem_budget_bytes(C, L, bt, x_itemsize, w_itemsize):
    """Rough tile-padded working-set estimate, used for vmem_limit_bytes."""
    lanes = _round_up(bt * L, 128)
    x_blk = _round_up(C, 8) * lanes * x_itemsize * 2           # double-buffered
    o_blk = _round_up(C, 8) * lanes * 4 * 2                    # double-buffered
    w_res = _round_up(3 * C, 8) * _round_up(C, 128) * w_itemsize
    b_res = _round_up(3 * C, 8) * 128 * 4
    rel_res = _round_up(C, 8) * _round_up(L, 128) * 4
    qkv = _round_up(3 * C, 8) * lanes * 4
    temps = 6 * _round_up(L, 8) * _round_up(L, 128) * 4        # energy/p/attn + slack
    return x_blk + o_blk + w_res + b_res + rel_res + qkv + temps


def _resident_spec(shape, index_map):
    # Constant index_map => block never changes; single-buffer it to halve its
    # VMEM footprint (matters most inside v7x's 64 MiB VMEM).
    try:
        return pl.BlockSpec(shape, index_map, pipeline_mode=pl.Buffered(1))
    except TypeError:  # older jax without pipeline_mode kwarg
        return pl.BlockSpec(shape, index_map)


def mhsa1d(x, wq, bq, wk, bk, wv, bv, rel, *, heads, mxu_dtype=None):
    """Pallas forward of MHSA1d.  x: (B, C, L); rel: (1, heads, C//heads, L).

    mxu_dtype: optional narrow dtype (e.g. jnp.bfloat16) for the MXU matmul
    operands — recommended on v5e/v6e/v7x when C / head_dim are large enough to
    be MXU-bound; accumulation and all softmax math stay in f32.
    """
    B, C, L = x.shape
    assert C % heads == 0, "channels must divide evenly into heads"
    d = C // heads

    bt = _choose_batch_tile(B, L)
    G = B // bt

    # Fuse the three pointwise-conv projections into one weight / bias.
    w_fused = jnp.concatenate([wq, wk, wv], axis=0)                    # (3C, C)
    b_fused = jnp.concatenate([bq, bk, bv], axis=0).reshape(3 * C, 1)  # (3C, 1) f32
    rel2d = rel.reshape(C, L)                                          # (H*d, L) f32

    # Wrapper-side narrow casts: x is the only per-step HBM stream, W the only
    # large resident array.  rel stays f32 (it is sliced dynamically per head).
    if mxu_dtype is not None:
        x_in = x.astype(mxu_dtype)
        w_fused = w_fused.astype(mxu_dtype)
    else:
        x_in = x

    # Lane-dense re-layout (pure layout plumbing in the wrapper):
    # (B, C, L) -> (G, C, bt*L); the pointwise k=1 projection is valid on the
    # fused (C, bt*L) slab, attention is done per batch element inside.
    x3d = x_in.reshape(G, bt, C, L).transpose(0, 2, 1, 3).reshape(G, C, bt * L)

    kernel = functools.partial(mhsa1d_kernel, heads=heads, head_dim=d,
                               batch_tile=bt, length=L, mxu_dtype=mxu_dtype)

    x_itemsize = jnp.dtype(x3d.dtype).itemsize
    w_itemsize = jnp.dtype(w_fused.dtype).itemsize
    flops = B * (2 * (3 * C) * C * L
                 + heads * (2 * (2 * d) * L * L + 2 * d * L * L))
    transcendentals = B * heads * L * L
    bytes_accessed = (x_itemsize * B * C * L + 4 * B * C * L
                      + w_itemsize * 3 * C * C + 4 * 3 * C + 4 * C * L)

    needed = _vmem_budget_bytes(C, L, bt, x_itemsize, w_itemsize)
    try:
        info = pltpu.get_tpu_info()
        vmem_cap = int(getattr(info, "vmem_capacity_bytes", 64 * 1024 * 1024))
    except Exception:
        vmem_cap = 64 * 1024 * 1024                    # v7x-safe fallback
    vmem_limit = int(min(max(needed * 3 // 2, 16 * 1024 * 1024),
                         vmem_cap - 4 * 1024 * 1024))

    out3d = pl.pallas_call(
        kernel,
        out_shape=jax.ShapeDtypeStruct((G, C, bt * L), x.dtype),
        grid_spec=pltpu.PrefetchScalarGridSpec(
            num_scalar_prefetch=0,
            grid=(G,),
            in_specs=[
                pl.BlockSpec((pl.Squeezed(), C, bt * L), lambda g: (g, 0, 0)),
                _resident_spec((3 * C, C), lambda g: (0, 0)),   # fused W (resident)
                _resident_spec((3 * C, 1), lambda g: (0, 0)),   # fused bias (resident)
                _resident_spec((C, L), lambda g: (0, 0)),       # rel (resident)
            ],
            out_specs=pl.BlockSpec((pl.Squeezed(), C, bt * L), lambda g: (g, 0, 0)),
            scratch_shapes=[pltpu.VMEM((3 * C, bt * L), jnp.float32)],
        ),
        compiler_params=pltpu.CompilerParams(
            dimension_semantics=("parallel",),
            vmem_limit_bytes=vmem_limit),
        cost_estimate=pl.CostEstimate(flops=flops,
                                      transcendentals=transcendentals,
                                      bytes_accessed=bytes_accessed),
    )(x3d, w_fused, b_fused, rel2d)

    # Undo the lane-dense re-layout.
    return out3d.reshape(G, C, bt, L).transpose(0, 2, 1, 3).reshape(B, C, L)


def mhsa1d_reference(x, wq, bq, wk, bk, wv, bv, rel, *, heads):
    """Pure-JAX reference mirroring the PyTorch forward exactly."""
    B, C, L = x.shape
    d = C // heads

    def proj(w, b):
        y = jnp.einsum('oc,bcl->bol', w, x) + b[None, :, None]
        return y.reshape(B, heads, d, L)

    q, k, v = proj(wq, bq), proj(wk, bk), proj(wv, bv)
    cc = jnp.einsum('bhdl,bhdm->bhlm', q, k)
    cp = jnp.einsum('hdl,bhdm->bhlm', rel[0], q)
    attn = jax.nn.softmax(cc + cp, axis=-1)
    out = jnp.einsum('bhdl,bhml->bhdm', v, attn)
    return out.reshape(B, C, L)


if __name__ == "__main__":
    B, C, L, H = 2, 32, 16, 4       # n_dims=32, length=16, heads=4 -> head_dim 8
    key = jax.random.PRNGKey(0)
    kx, kwq, kbq, kwk, kbk, kwv, kbv, kr = jax.random.split(key, 8)

    x   = jax.random.normal(kx,  (B, C, L), dtype=jnp.float32)
    wq  = jax.random.normal(kwq, (C, C), dtype=jnp.float32) * 0.1
    bq  = jax.random.normal(kbq, (C,),   dtype=jnp.float32) * 0.1
    wk  = jax.random.normal(kwk, (C, C), dtype=jnp.float32) * 0.1
    bk  = jax.random.normal(kbk, (C,),   dtype=jnp.float32) * 0.1
    wv  = jax.random.normal(kwv, (C, C), dtype=jnp.float32) * 0.1
    bv  = jax.random.normal(kbv, (C,),   dtype=jnp.float32) * 0.1
    rel = jax.random.normal(kr,  (1, H, C // H, L), dtype=jnp.float32)

    ref = mhsa1d_reference(x, wq, bq, wk, bk, wv, bv, rel, heads=H)

    # f32 MXU operands (default path; tolerance loosened only for the EUP
    # approximate reciprocal, ~2^-12 relative).
    out = jax.block_until_ready(mhsa1d(x, wq, bq, wk, bk, wv, bv, rel, heads=H))
    assert out.shape == (B, C, L)
    assert jnp.allclose(out, ref, atol=2e-3, rtol=2e-3), "f32 mismatch vs reference"

    # bf16 MXU operands (recommended for larger C); softmax math stays f32.
    out_bf = jax.block_until_ready(
        mhsa1d(x, wq, bq, wk, bk, wv, bv, rel, heads=H, mxu_dtype=jnp.bfloat16))
    assert jnp.allclose(out_bf, ref, atol=5e-2, rtol=5e-2), "bf16 mismatch vs reference"

    print("KERNEL_OK")
</pallas_src>

<mosaic_0001>
module attributes {stable_mosaic.version = 11 : i64} {
  func.func @mhsa1d_kernel(%arg0: i32, %arg1: memref<1x32x32xf32, #tpu.memory_space<vmem>>, %arg2: memref<96x32xf32, #tpu.memory_space<vmem>>, %arg3: memref<96x1xf32, #tpu.memory_space<vmem>>, %arg4: memref<32x16xf32, #tpu.memory_space<vmem>>, %arg5: memref<1x32x32xf32, #tpu.memory_space<vmem>>, %arg6: memref<96x32xf32, #tpu.memory_space<vmem>>) attributes {dimension_semantics = [#tpu.dimension_semantics<parallel>], iteration_bounds = array<i64: 1>, scalar_prefetch = 0 : i64, scratch_operands = 1 : i64, tpu.core_type = #tpu.core_type<tc>, window_params = [{transform_indices = @transform_0, window_bounds = array<i64: 1, 32, 32>}, {pipeline_mode = #tpu.pipeline_mode<synchronous>, transform_indices = @transform_1, window_bounds = array<i64: 96, 32>}, {pipeline_mode = #tpu.pipeline_mode<synchronous>, transform_indices = @transform_2, window_bounds = array<i64: 96, 1>}, {pipeline_mode = #tpu.pipeline_mode<synchronous>, transform_indices = @transform_3, window_bounds = array<i64: 32, 16>}, {transform_indices = @transform_4, window_bounds = array<i64: 1, 32, 32>}]} {
    %c0 = arith.constant 0 : index
    %c0_0 = arith.constant 0 : index
    %0 = vector.load %arg2[%c0, %c0_0] : memref<96x32xf32, #tpu.memory_space<vmem>>, vector<96x32xf32>
    %c0_1 = arith.constant 0 : index
    %c0_2 = arith.constant 0 : index
    %c0_3 = arith.constant 0 : index
    %1 = vector.load %arg1[%c0_1, %c0_2, %c0_3] : memref<1x32x32xf32, #tpu.memory_space<vmem>>, vector<1x32x32xf32>
    %2 = vector.shape_cast %1 : vector<1x32x32xf32> to vector<32x32xf32>
    %cst = arith.constant dense<0.000000e+00> : vector<96x32xf32>
    %3 = tpu.matmul %0, %2, %cst {dimension_numbers = #tpu.dot_dimension_numbers<[1], [0], [0], [1], [0, 0, 1, 1], [], []>} : vector<96x32xf32>, vector<32x32xf32>, vector<96x32xf32> -> vector<96x32xf32>
    %c0_4 = arith.constant 0 : index
    %c0_5 = arith.constant 0 : index
    %4 = vector.load %arg3[%c0_4, %c0_5] : memref<96x1xf32, #tpu.memory_space<vmem>>, vector<96x1xf32>
    %5 = vector.broadcast %4 : vector<96x1xf32> to vector<96x32xf32>
    %6 = arith.addf %3, %5 : vector<96x32xf32>
    %c0_6 = arith.constant 0 : index
    %c0_7 = arith.constant 0 : index
    %7 = vector.load %arg6[%c0_6, %c0_7] : memref<96x32xf32, #tpu.memory_space<vmem>>, vector<96x32xf32>
    tpu.vector_store %arg6[%c0_6, %c0_7], %6 {strides = array<i32>} : memref<96x32xf32, #tpu.memory_space<vmem>>, vector<96x32xf32>,
    %c0_i32 = arith.constant 0 : i32
    %c4_i32 = arith.constant 4 : i32
    %8 = arith.addi %c0_i32, %c4_i32 : i32
    %c1_i32 = arith.constant 1 : i32
    scf.for %arg7 = %c0_i32 to %8 step %c1_i32  : i32 {
      %c8_i32 = arith.constant 8 : i32
      %10 = arith.muli %arg7, %c8_i32 : i32
      %11 = tpu.assume_multiple %10, 8 : i32
      %c8_i32_13 = arith.constant 8 : i32
      %12 = arith.muli %arg7, %c8_i32_13 : i32
      %c32_i32 = arith.constant 32 : i32
      %13 = arith.addi %c32_i32, %12 : i32
      %14 = tpu.assume_multiple %13, 8 : i32
      %c8_i32_14 = arith.constant 8 : i32
      %15 = arith.muli %arg7, %c8_i32_14 : i32
      %c64_i32 = arith.constant 64 : i32
      %16 = arith.addi %c64_i32, %15 : i32
      %17 = tpu.assume_multiple %16, 8 : i32
      %18 = arith.index_cast %11 : i32 to index
      %c0_15 = arith.constant 0 : index
      %19 = vector.load %arg6[%18, %c0_15] : memref<96x32xf32, #tpu.memory_space<vmem>>, vector<8x16xf32>
      %20 = arith.index_cast %14 : i32 to index
      %c0_16 = arith.constant 0 : index
      %21 = vector.load %arg6[%20, %c0_16] : memref<96x32xf32, #tpu.memory_space<vmem>>, vector<8x16xf32>
      %22 = arith.index_cast %17 : i32 to index
      %c0_17 = arith.constant 0 : index
      %23 = vector.load %arg6[%22, %c0_17] : memref<96x32xf32, #tpu.memory_space<vmem>>, vector<8x16xf32>
      %24 = arith.index_cast %11 : i32 to index
      %c0_18 = arith.constant 0 : index
      %25 = vector.load %arg4[%24, %c0_18] : memref<32x16xf32, #tpu.memory_space<vmem>>, vector<8x16xf32>
      %26 = tpu.concatenate %19, %25 in 0 : vector<8x16xf32>, vector<8x16xf32> -> vector<16x16xf32>
      %27 = tpu.concatenate %21, %19 in 0 : vector<8x16xf32>, vector<8x16xf32> -> vector<16x16xf32>
      %cst_19 = arith.constant dense<0.000000e+00> : vector<16x16xf32>
      %28 = tpu.matmul %26, %27, %cst_19 {dimension_numbers = #tpu.dot_dimension_numbers<[0], [0], [1], [1], [0, 1, 1, 1], [], []>} : vector<16x16xf32>, vector<16x16xf32>, vector<16x16xf32> -> vector<16x16xf32>
      %cst_20 = arith.constant dense<0xFF800000> : vector<16xf32>
      %29 = vector.multi_reduction <maximumf>, %28, %cst_20 [1] : vector<16x16xf32> to vector<16xf32>
      %30 = vector.shape_cast %29 : vector<16xf32> to vector<16x1xf32>
      %31 = vector.broadcast %30 : vector<16x1xf32> to vector<16x16xf32>
      %32 = arith.subf %28, %31 : vector<16x16xf32>
      %33 = math.exp %32 : vector<16x16xf32>
      %cst_21 = arith.constant dense<0.000000e+00> : vector<16xf32>
      %34 = vector.multi_reduction <add>, %33, %cst_21 [1] : vector<16x16xf32> to vector<16xf32>
      %35 = vector.shape_cast %34 : vector<16xf32> to vector<16x1xf32>
      %36 = tpu.reciprocal %35 {approx = true} : vector<16x1xf32> -> vector<16x1xf32>
      %37 = vector.broadcast %36 : vector<16x1xf32> to vector<16x16xf32>
      %38 = arith.mulf %33, %37 : vector<16x16xf32>
      %cst_22 = arith.constant dense<0.000000e+00> : vector<8x16xf32>
      %39 = tpu.matmul %23, %38, %cst_22 {dimension_numbers = #tpu.dot_dimension_numbers<[1], [1], [0], [0], [0, 0, 1, 0], [], []>} : vector<8x16xf32>, vector<16x16xf32>, vector<8x16xf32> -> vector<8x16xf32>
      %c0_23 = arith.constant 0 : index
      %40 = arith.index_cast %11 : i32 to index
      %c0_24 = arith.constant 0 : index
      %41 = vector.load %arg5[%c0_23, %40, %c0_24] : memref<1x32x32xf32, #tpu.memory_space<vmem>>, vector<1x8x16xf32>
      %42 = vector.shape_cast %41 : vector<1x8x16xf32> to vector<8x16xf32>
      %43 = vector.shape_cast %39 : vector<8x16xf32> to vector<1x8x16xf32>
      tpu.vector_store %arg5[%c0_23, %40, %c0_24], %43 {strides = array<i32>} : memref<1x32x32xf32, #tpu.memory_space<vmem>>, vector<1x8x16xf32>,
    }
    %c4_i32_8 = arith.constant 4 : i32
    %c0_i32_9 = arith.constant 0 : i32
    %c4_i32_10 = arith.constant 4 : i32
    %9 = arith.addi %c0_i32_9, %c4_i32_10 : i32
    %c1_i32_11 = arith.constant 1 : i32
    scf.for %arg7 = %c0_i32_9 to %9 step %c1_i32_11  : i32 {
      %c8_i32 = arith.constant 8 : i32
      %10 = arith.muli %arg7, %c8_i32 : i32
      %11 = tpu.assume_multiple %10, 8 : i32
      %c8_i32_13 = arith.constant 8 : i32
      %12 = arith.muli %arg7, %c8_i32_13 : i32
      %c32_i32 = arith.constant 32 : i32
      %13 = arith.addi %c32_i32, %12 : i32
      %14 = tpu.assume_multiple %13, 8 : i32
      %c8_i32_14 = arith.constant 8 : i32
      %15 = arith.muli %arg7, %c8_i32_14 : i32
      %c64_i32 = arith.constant 64 : i32
      %16 = arith.addi %c64_i32, %15 : i32
      %17 = tpu.assume_multiple %16, 8 : i32
      %18 = arith.index_cast %11 : i32 to index
      %c16 = arith.constant 16 : index
      %19 = vector.load %arg6[%18, %c16] : memref<96x32xf32, #tpu.memory_space<vmem>>, vector<8x16xf32>
      %20 = arith.index_cast %14 : i32 to index
      %c16_15 = arith.constant 16 : index
      %21 = vector.load %arg6[%20, %c16_15] : memref<96x32xf32, #tpu.memory_space<vmem>>, vector<8x16xf32>
      %22 = arith.index_cast %17 : i32 to index
      %c16_16 = arith.constant 16 : index
      %23 = vector.load %arg6[%22, %c16_16] : memref<96x32xf32, #tpu.memory_space<vmem>>, vector<8x16xf32>
      %24 = arith.index_cast %11 : i32 to index
      %c0_17 = arith.constant 0 : index
      %25 = vector.load %arg4[%24, %c0_17] : memref<32x16xf32, #tpu.memory_space<vmem>>, vector<8x16xf32>
      %26 = tpu.concatenate %19, %25 in 0 : vector<8x16xf32>, vector<8x16xf32> -> vector<16x16xf32>
      %27 = tpu.concatenate %21, %19 in 0 : vector<8x16xf32>, vector<8x16xf32> -> vector<16x16xf32>
      %cst_18 = arith.constant dense<0.000000e+00> : vector<16x16xf32>
      %28 = tpu.matmul %26, %27, %cst_18 {dimension_numbers = #tpu.dot_dimension_numbers<[0], [0], [1], [1], [0, 1, 1, 1], [], []>} : vector<16x16xf32>, vector<16x16xf32>, vector<16x16xf32> -> vector<16x16xf32>
      %cst_19 = arith.constant dense<0xFF800000> : vector<16xf32>
      %29 = vector.multi_reduction <maximumf>, %28, %cst_19 [1] : vector<16x16xf32> to vector<16xf32>
      %30 = vector.shape_cast %29 : vector<16xf32> to vector<16x1xf32>
      %31 = vector.broadcast %30 : vector<16x1xf32> to vector<16x16xf32>
      %32 = arith.subf %28, %31 : vector<16x16xf32>
      %33 = math.exp %32 : vector<16x16xf32>
      %cst_20 = arith.constant dense<0.000000e+00> : vector<16xf32>
      %34 = vector.multi_reduction <add>, %33, %cst_20 [1] : vector<16x16xf32> to vector<16xf32>
      %35 = vector.shape_cast %34 : vector<16xf32> to vector<16x1xf32>
      %36 = tpu.reciprocal %35 {approx = true} : vector<16x1xf32> -> vector<16x1xf32>
      %37 = vector.broadcast %36 : vector<16x1xf32> to vector<16x16xf32>
      %38 = arith.mulf %33, %37 : vector<16x16xf32>
      %cst_21 = arith.constant dense<0.000000e+00> : vector<8x16xf32>
      %39 = tpu.matmul %23, %38, %cst_21 {dimension_numbers = #tpu.dot_dimension_numbers<[1], [1], [0], [0], [0, 0, 1, 0], [], []>} : vector<8x16xf32>, vector<16x16xf32>, vector<8x16xf32> -> vector<8x16xf32>
      %c0_22 = arith.constant 0 : index
      %40 = arith.index_cast %11 : i32 to index
      %c16_23 = arith.constant 16 : index
      %41 = vector.load %arg5[%c0_22, %40, %c16_23] : memref<1x32x32xf32, #tpu.memory_space<vmem>>, vector<1x8x16xf32>
      %42 = vector.shape_cast %41 : vector<1x8x16xf32> to vector<8x16xf32>
      %43 = vector.shape_cast %39 : vector<8x16xf32> to vector<1x8x16xf32>
      tpu.vector_store %arg5[%c0_22, %40, %c16_23], %43 {strides = array<i32>} : memref<1x32x32xf32, #tpu.memory_space<vmem>>, vector<1x8x16xf32>,
    }
    %c4_i32_12 = arith.constant 4 : i32
    return
  }
  func.func @transform_0(%arg0: i32) -> (i32, i32, i32) {
    %c0_i32 = arith.constant 0 : i32
    %c0_i32_0 = arith.constant 0 : i32
    %c0_i32_1 = arith.constant 0 : i32
    return %arg0, %c0_i32, %c0_i32_0 : i32, i32, i32
  }
  func.func @transform_1(%arg0: i32) -> (i32, i32) {
    %c0_i32 = arith.constant 0 : i32
    %c0_i32_0 = arith.constant 0 : i32
    %c0_i32_1 = arith.constant 0 : i32
    return %c0_i32, %c0_i32_0 : i32, i32
  }
  func.func @transform_2(%arg0: i32) -> (i32, i32) {
    %c0_i32 = arith.constant 0 : i32
    %c0_i32_0 = arith.constant 0 : i32
    %c0_i32_1 = arith.constant 0 : i32
    return %c0_i32, %c0_i32_0 : i32, i32
  }
  func.func @transform_3(%arg0: i32) -> (i32, i32) {
    %c0_i32 = arith.constant 0 : i32
    %c0_i32_0 = arith.constant 0 : i32
    %c0_i32_1 = arith.constant 0 : i32
    return %c0_i32, %c0_i32_0 : i32, i32
  }
  func.func @transform_4(%arg0: i32) -> (i32, i32, i32) {
    %c0_i32 = arith.constant 0 : i32
    %c0_i32_0 = arith.constant 0 : i32
    %c0_i32_1 = arith.constant 0 : i32
    return %arg0, %c0_i32, %c0_i32_0 : i32, i32, i32
  }
}

</mosaic_0001>

<llo_original>
// kernel: tpu_custom_call.1
$region0: #{tpu_custom_call.1}
  #allocation0 [shape = 'u32[]', space=smem, size = 0x4, offset = 0x4, fixed_abs, tag = 'smem constant byte address 0x4 - core index']
  #allocation1 [shape = 'u32[72,128]{1,0:T(1,128)}', space=vmem, size = 0x9000, scoped, tag = 'internal scratch']
  #allocation2 [shape = 'f32[96,32]{1,0:T(8,128)}', space=vmem, size = 0xc000, scoped, tag = 'scratch operand']
  %s0 = inlined_call_operand.vmem [shape: f32[1,32,32], index: 0, kind: input, shape index: {}]
  %s1 = inlined_call_operand.vmem [shape: f32[96,32], index: 1, kind: input, shape index: {}]
  %s2 = inlined_call_operand.vmem [shape: f32[96,1], index: 2, kind: input, shape index: {}]
  %s3 = inlined_call_operand.vmem [shape: f32[32,16], index: 3, kind: input, shape index: {}]
  %s4 = inlined_call_operand.hbm [shape: f32[1,32,32], index: 4, kind: output, shape index: {}]
  %s5 = sld [smem:[#allocation0]]
  $region40: #{tpu_custom_call.1} parent=0
    _
  %s7 = ssub.s32 1, %s5
  %s8 = scalar_select 0, %s7, %s5
  $region1: #{tpu_custom_call.1} parent=0
    #allocation3 [shape = 'u8[16384]{0}', space=vmem, size = 0x4000, scoped, tag = 'output window, operand 0, single buffered']
    #allocation4 [shape = 's32[1]{0}', space=sflag, size = 0x4, scoped, tag = 'scoped memory for tpu_custom_call.1']
    %9 = vsyncpa [#allocation4], 0
    // Predicated region
    $region2: #{tpu_custom_call.1} parent=1 // pred_check
      _
    $region3: #{tpu_custom_call.1} parent=1 // pred_check_branch
      %11 = sbr.rel (0) target = $region5
    $region4: #{tpu_custom_call.1} parent=1 // pred_region
      _
    $region5: #{tpu_custom_call.1} parent=1 // pred_fallthru
      _
    // Predicated region
    $region6: #{tpu_custom_call.1} parent=1 // pred_check
      _
    $region7: #{tpu_custom_call.1} parent=1 // pred_check_branch
      %13 = sbr.rel (0) target = $region9
    $region8: #{tpu_custom_call.1} parent=1 // pred_region
      _
    $region9: #{tpu_custom_call.1} parent=1 // pred_fallthru
      _
    // Predicated region
    $region10: #{tpu_custom_call.1} parent=1 // pred_check
      _
    $region11: #{tpu_custom_call.1} parent=1 // pred_check_branch
      %15 = sbr.rel (0) target = $region13
    $region12: #{tpu_custom_call.1} parent=1 // pred_region
      _
    $region13: #{tpu_custom_call.1} parent=1 // pred_fallthru
      _
    // Predicated region
    $region14: #{tpu_custom_call.1} parent=1 // pred_check
      _
    $region15: #{tpu_custom_call.1} parent=1 // pred_check_branch
      %17 = sbr.rel (0) target = $region17
    $region16: #{tpu_custom_call.1} parent=1 // pred_region
      _
    $region17: #{tpu_custom_call.1} parent=1 // pred_fallthru
      _
    %v18 = vld [vmem:[%s1] sm:$0xff]
    %v19 = vld [vmem:[%s1 + $0x8] sm:$0xff]
    %v20 = vld [vmem:[%s1 + $0x10] sm:$0xff]
    %v21 = vld [vmem:[%s1 + $0x18] sm:$0xff]
    %v22 = vld [vmem:[%s1 + $0x20] sm:$0xff]
    %v23 = vld [vmem:[%s1 + $0x28] sm:$0xff]
    %v24 = vld [vmem:[%s1 + $0x30] sm:$0xff]
    %v25 = vld [vmem:[%s1 + $0x38] sm:$0xff]
    %v26 = vld [vmem:[%s1 + $0x40] sm:$0xff]
    %v27 = vld [vmem:[%s1 + $0x48] sm:$0xff]
    %v28 = vld [vmem:[%s1 + $0x50] sm:$0xff]
    %v29 = vld [vmem:[%s1 + $0x58] sm:$0xff]
    %v30 = vld [vmem:[%s0] sm:$0xff]
    %v31 = vld [vmem:[%s0 + $0x8] sm:$0xff]
    %v32 = vld [vmem:[%s0 + $0x10] sm:$0xff]
    %v33 = vld [vmem:[%s0 + $0x18] sm:$0xff]
    %v34 = vld [vmem:[%s2] sm:$0xff]
    %v35 = vld [vmem:[%s2 + $0x8] sm:$0xff]
    %v36 = vld [vmem:[%s2 + $0x10] sm:$0xff]
    %v37 = vld [vmem:[%s2 + $0x18] sm:$0xff]
    %v38 = vld [vmem:[%s2 + $0x20] sm:$0xff]
    %v39 = vld [vmem:[%s2 + $0x28] sm:$0xff]
    %v40 = vld [vmem:[%s2 + $0x30] sm:$0xff]
    %v41 = vld [vmem:[%s2 + $0x38] sm:$0xff]
    %v42 = vld [vmem:[%s2 + $0x40] sm:$0xff]
    %v43 = vld [vmem:[%s2 + $0x48] sm:$0xff]
    %v44 = vld [vmem:[%s2 + $0x50] sm:$0xff]
    %v45 = vld [vmem:[%s2 + $0x58] sm:$0xff]
    %47 = vset.pattern.permute.xlu0 0
    %48 = vperm.xlu0 %47, %v34
    %v49 = vpop.permute.xlu0 %48
    %52 = vset.pattern.permute.xlu0 0
    %53 = vperm.xlu0 %52, %v35
    %v54 = vpop.permute.xlu0 %53
    %57 = vset.pattern.permute.xlu0 0
    %58 = vperm.xlu0 %57, %v36
    %v59 = vpop.permute.xlu0 %58
    %62 = vset.pattern.permute.xlu0 0
    %63 = vperm.xlu0 %62, %v37
    %v64 = vpop.permute.xlu0 %63
    %67 = vset.pattern.permute.xlu0 0
    %68 = vperm.xlu0 %67, %v38
    %v69 = vpop.permute.xlu0 %68
    %72 = vset.pattern.permute.xlu0 0
    %73 = vperm.xlu0 %72, %v39
    %v74 = vpop.permute.xlu0 %73
    %77 = vset.pattern.permute.xlu0 0
    %78 = vperm.xlu0 %77, %v40
    %v79 = vpop.permute.xlu0 %78
    %82 = vset.pattern.permute.xlu0 0
    %83 = vperm.xlu0 %82, %v41
    %v84 = vpop.permute.xlu0 %83
    %87 = vset.pattern.permute.xlu0 0
    %88 = vperm.xlu0 %87, %v42
    %v89 = vpop.permute.xlu0 %88
    %92 = vset.pattern.permute.xlu0 0
    %93 = vperm.xlu0 %92, %v43
    %v94 = vpop.permute.xlu0 %93
    %97 = vset.pattern.permute.xlu0 0
    %98 = vperm.xlu0 %97, %v44
    %v99 = vpop.permute.xlu0 %98
    %102 = vset.pattern.permute.xlu0 0
    %103 = vperm.xlu0 %102, %v45
    %v104 = vpop.permute.xlu0 %103
    %vm106 = vcmask 261120
    %v108 = vsel %vm106, %v18, 0
    %v111 = vsel %vm106, %v19, 0
    %v114 = vsel %vm106, %v20, 0
    %v117 = vsel %vm106, %v21, 0
    %v120 = vsel %vm106, %v22, 0
    %v123 = vsel %vm106, %v23, 0
    %v126 = vsel %vm106, %v24, 0
    %v129 = vsel %vm106, %v25, 0
    %v132 = vsel %vm106, %v26, 0
    %v135 = vsel %vm106, %v27, 0
    %v138 = vsel %vm106, %v28, 0
    %v141 = vsel %vm106, %v29, 0
    %143 = vmatpush.msra.mxu0 0.0
    %144 = vmatpush.msra.mxu0 0.0
    %145 = vmatpush.msra.mxu0 0.0
    %146 = vmatpush.msra.mxu0 0.0
    %147 = vmatpush.msra.mxu0 0.0
    %148 = vmatpush.msra.mxu0 0.0
    %149 = vmatpush.msra.mxu0 0.0
    %150 = vmatpush.msra.mxu0 0.0
    %151 = vmatpush.msra.mxu0 0.0
    %152 = vmatpush.msra.mxu0 0.0
    %153 = vmatpush.msra.mxu0 0.0
    %154 = vmatpush.msra.mxu0 0.0
    %155 = vmatpush.msra.mxu0 %v33
    %156 = vmatpush.msra.mxu0 %v32
    %157 = vmatpush.msra.mxu0 %v31
    %158 = vmatpush.msra.mxu0 %v30
    %159 = vmatmul.f32.gmra.mxu0 %v108
    %v160 = vpop.f32.mrf.mxu0
    %v161 = vadd.f32 %v49, %v160
    %162 = vmatmul.f32.gmra.mxu0 %v111
    %v163 = vpop.f32.mrf.mxu0
    %v164 = vadd.f32 %v54, %v163
    %165 = vmatmul.f32.gmra.mxu0 %v114
    %v166 = vpop.f32.mrf.mxu0
    %v167 = vadd.f32 %v59, %v166
    %168 = vmatmul.f32.gmra.mxu0 %v117
    %v169 = vpop.f32.mrf.mxu0
    %v170 = vadd.f32 %v64, %v169
    %171 = vmatmul.f32.gmra.mxu0 %v120
    %v172 = vpop.f32.mrf.mxu0
    %v173 = vadd.f32 %v69, %v172
    %174 = vmatmul.f32.gmra.mxu0 %v123
    %v175 = vpop.f32.mrf.mxu0
    %v176 = vadd.f32 %v74, %v175
    %177 = vmatmul.f32.gmra.mxu0 %v126
    %v178 = vpop.f32.mrf.mxu0
    %v179 = vadd.f32 %v79, %v178
    %180 = vmatmul.f32.gmra.mxu0 %v129
    %v181 = vpop.f32.mrf.mxu0
    %v182 = vadd.f32 %v84, %v181
    %183 = vmatmul.f32.gmra.mxu0 %v132
    %v184 = vpop.f32.mrf.mxu0
    %v185 = vadd.f32 %v89, %v184
    %186 = vmatmul.f32.gmra.mxu0 %v135
    %v187 = vpop.f32.mrf.mxu0
    %v188 = vadd.f32 %v94, %v187
    %189 = vmatmul.f32.gmra.mxu0 %v138
    %v190 = vpop.f32.mrf.mxu0
    %v191 = vadd.f32 %v99, %v190
    %192 = vmatmul.f32.gmra.mxu0 %v141
    %v193 = vpop.f32.mrf.mxu0
    %v194 = vadd.f32 %v104, %v193
    %195 = vdwg.mxu0
    %196 = vst.msk [vmem:[#allocation2] sm:$0xff] %vm106, %v161
    %197 = vst.msk [vmem:[#allocation2 + $0x8] sm:$0xff] %vm106, %v164
    %198 = vst.msk [vmem:[#allocation2 + $0x10] sm:$0xff] %vm106, %v167
    %199 = vst.msk [vmem:[#allocation2 + $0x18] sm:$0xff] %vm106, %v170
    %200 = vst.msk [vmem:[#allocation2 + $0x20] sm:$0xff] %vm106, %v173
    %201 = vst.msk [vmem:[#allocation2 + $0x28] sm:$0xff] %vm106, %v176
    %202 = vst.msk [vmem:[#allocation2 + $0x30] sm:$0xff] %vm106, %v179
    %203 = vst.msk [vmem:[#allocation2 + $0x38] sm:$0xff] %vm106, %v182
    %204 = vst.msk [vmem:[#allocation2 + $0x40] sm:$0xff] %vm106, %v185
    %205 = vst.msk [vmem:[#allocation2 + $0x48] sm:$0xff] %vm106, %v188
    %206 = vst.msk [vmem:[#allocation2 + $0x50] sm:$0xff] %vm106, %v191
    %207 = vst.msk [vmem:[#allocation2 + $0x58] sm:$0xff] %vm106, %v194
    loop: start=0, step=1, limit=4
    $region18: #{tpu_custom_call.1} parent=1 // loop_pre_header
      _
    $region19: #{tpu_custom_call.1} parent=1 // loop_header
      %s209 = sphi 0, %s213
      %p210 = scmp.ge.s32.totalorder %s209, 4
    $region20: #{tpu_custom_call.1} parent=1 // loop_header_branch
      %212 = sbr.rel (%p210) target = $region24
    $region21: #{tpu_custom_call.1} parent=1 // loop_body
      %s214 = smul.u32 %s209, 8
      %s215 = sadd.s32 %s214, 32
      %s216 = sadd.s32 %s214, 64
      %s217 = scalar_lea.vmem [#allocation2], %s214
      %v218 = vld [vmem:[%s217] sm:$0xff]
      %s219 = scalar_lea.vmem [#allocation2], %s215
      %v220 = vld [vmem:[%s219] sm:$0xff]
      %s221 = scalar_lea.vmem [#allocation2], %s216
      %v222 = vld [vmem:[%s221] sm:$0xff]
      %s223 = scalar_lea.vmem %s3, %s214
      %v224 = vld [vmem:[%s223] sm:$0xff]
      %225 = vxpose.xlu0.b32.start [1/16] %v218, 128
      %226 = vxpose.xlu0.b32.cont [2/16] %v224, 128
      %227 = vxpose.xlu0.b32.cont [3/16] 0.0, 128
      %228 = vxpose.xlu0.b32.cont [4/16] 0.0, 128
      %229 = vxpose.xlu0.b32.cont [5/16] 0.0, 128
      %230 = vxpose.xlu0.b32.cont [6/16] 0.0, 128
      %231 = vxpose.xlu0.b32.cont [7/16] 0.0, 128
      %232 = vxpose.xlu0.b32.cont [8/16] 0.0, 128
      %233 = vxpose.xlu0.b32.cont [9/16] 0.0, 128
      %234 = vxpose.xlu0.b32.cont [10/16] 0.0, 128
      %235 = vxpose.xlu0.b32.cont [11/16] 0.0, 128
      %236 = vxpose.xlu0.b32.cont [12/16] 0.0, 128
      %237 = vxpose.xlu0.b32.cont [13/16] 0.0, 128
      %238 = vxpose.xlu0.b32.cont [14/16] 0.0, 128
      %239 = vxpose.xlu0.b32.cont [15/16] 0.0, 128
      %240 = vxpose.xlu0.b32.end [16/16] 0.0, 128
      %v241 = vpop.trf.xlu0
      %v242 = vpop.trf.xlu0
      %v243 = vpop.trf.xlu0
      %v244 = vpop.trf.xlu0
      %v245 = vpop.trf.xlu0
      %v246 = vpop.trf.xlu0
      %v247 = vpop.trf.xlu0
      %v248 = vpop.trf.xlu0
      %v249 = vpop.trf.xlu0
      %v250 = vpop.trf.xlu0
      %v251 = vpop.trf.xlu0
      %v252 = vpop.trf.xlu0
      %v253 = vpop.trf.xlu0
      %v254 = vpop.trf.xlu0
      %v255 = vpop.trf.xlu0
      %v256 = vpop.trf.xlu0
      %vm257 = vcmask 130048
      %v259 = vsel %vm257, %v241, 0
      %v262 = vsel %vm257, %v242, 0
      %264 = vmatpush.msra.mxu0 0.0
      %265 = vmatpush.msra.mxu0 0.0
      %266 = vmatpush.msra.mxu0 0.0
      %267 = vmatpush.msra.mxu0 0.0
      %268 = vmatpush.msra.mxu0 0.0
      %269 = vmatpush.msra.mxu0 0.0
      %270 = vmatpush.msra.mxu0 0.0
      %271 = vmatpush.msra.mxu0 0.0
      %272 = vmatpush.msra.mxu0 0.0
      %273 = vmatpush.msra.mxu0 0.0
      %274 = vmatpush.msra.mxu0 0.0
      %275 = vmatpush.msra.mxu0 0.0
      %276 = vmatpush.msra.mxu0 0.0
      %277 = vmatpush.msra.mxu0 0.0
      %278 = vmatpush.msra.mxu0 %v218
      %279 = vmatpush.msra.mxu0 %v220
      %280 = vmatmul.f32.gmra.mxu0 %v259
      %v281 = vpop.f32.mrf.mxu0
      %v282 = vadd.f32 0.0, %v281
      %283 = vmatmul.f32.gmra.mxu0 %v262
      %v284 = vpop.f32.mrf.mxu0
      %v285 = vadd.f32 0.0, %v284
      %286 = vdwg.mxu0
      %v287 = vsel %vm257, %v282, -inf
      %288 = vmax.xlane.f32.xlu0 %v287
      %v289 = vpop.xlane.xlu0 %288
      %v290 = vsel %vm257, %v285, -inf
      %291 = vmax.xlane.f32.xlu0 %v290
      %v292 = vpop.xlane.xlu0 %291
      %v293 = vsub.f32 %v282, %v289
      %v294 = vsub.f32 %v285, %v292
      %v295 = vmul.f32 %v293, 1.442695
      %v296 = vpow.pop %v295
      %v297 = vmul.f32 %v294, 1.442695
      %v298 = vpow.pop %v297
      %v299 = vsel %vm257, %v296, 0.0
      %300 = vadd.xlane.f32.xlu0 %v299
      %v301 = vpop.xlane.xlu0 %300
      %v302 = vsel %vm257, %v298, 0.0
      %303 = vadd.xlane.f32.xlu0 %v302
      %v304 = vpop.xlane.xlu0 %303
      %v305 = vrcp.pop %v301
      %v306 = vrcp.pop %v304
      %v307 = vmul.f32 %v296, %v305
      %v308 = vmul.f32 %v298, %v306
      %v310 = vsel %vm257, %v222, 0
      %v313 = vsel %vm257, %v307, 0
      %v316 = vsel %vm257, %v308, 0
      %318 = vmatpush.xpose.msra.mxu0 0.0
      %319 = vmatpush.xpose.msra.mxu0 0.0
      %320 = vmatpush.xpose.msra.mxu0 0.0
      %321 = vmatpush.xpose.msra.mxu0 0.0
      %322 = vmatpush.xpose.msra.mxu0 0.0
      %323 = vmatpush.xpose.msra.mxu0 0.0
      %324 = vmatpush.xpose.msra.mxu0 0.0
      %325 = vmatpush.xpose.msra.mxu0 0.0
      %326 = vmatpush.xpose.msra.mxu0 0.0
      %327 = vmatpush.xpose.msra.mxu0 0.0
      %328 = vmatpush.xpose.msra.mxu0 0.0
      %329 = vmatpush.xpose.msra.mxu0 0.0
      %330 = vmatpush.xpose.msra.mxu0 0.0
      %331 = vmatpush.xpose.msra.mxu0 0.0
      %332 = vmatpush.xpose.msra.mxu0 %v316
      %333 = vmatpush.xpose.msra.mxu0 %v313
      %334 = vmatmul.f32.gmra.mxu0 %v310
      %v335 = vpop.f32.mrf.mxu0
      %v336 = vadd.f32 0.0, %v335
      %337 = vdwg.mxu0
      %s338 = scalar_lea.vmem [#allocation3], %s214
      %339 = vst.msk [vmem:[%s338] sm:$0xff] %vm257, %v336
    $region22: #{tpu_custom_call.1} parent=1 // loop_footer
      %s213 = sadd.s32 1, %s209
    $region23: #{tpu_custom_call.1} parent=1 // loop_footer_branch
      %208 = sbr.rel target = $region19
    $region24: #{tpu_custom_call.1} parent=1 // loop_exit
      _
    loop: start=0, step=1, limit=4
    $region25: #{tpu_custom_call.1} parent=1 // loop_pre_header
      _
    $region26: #{tpu_custom_call.1} parent=1 // loop_header
      %s341 = sphi 0, %s345
      %p342 = scmp.ge.s32.totalorder %s341, 4
    $region27: #{tpu_custom_call.1} parent=1 // loop_header_branch
      %344 = sbr.rel (%p342) target = $region31
    $region28: #{tpu_custom_call.1} parent=1 // loop_body
      %s346 = smul.u32 %s341, 8
      %s347 = sadd.s32 %s346, 32
      %s348 = sadd.s32 %s346, 64
      %s349 = scalar_lea.vmem [#allocation2], %s346
      %v350 = vld [vmem:[%s349] sm:$0xff]
      %s351 = scalar_lea.vmem [#allocation2], %s347
      %v352 = vld [vmem:[%s351] sm:$0xff]
      %s353 = scalar_lea.vmem [#allocation2], %s348
      %v354 = vld [vmem:[%s353] sm:$0xff]
      %s355 = scalar_lea.vmem %s3, %s346
      %v356 = vld [vmem:[%s355] sm:$0xff]
      %358 = vrot.lane.b32.xlu0 %v356, 16
      %v359 = vpop.permute.xlu0 %358
      %361 = vrot.lane.b32.xlu0 %v350, 112
      %v362 = vpop.permute.xlu0 %361
      %363 = vrot.lane.b32.xlu0 %v359, 112
      %v364 = vpop.permute.xlu0 %363
      %367 = vxpose.xlu0.b32.start [1/16] %v362, 128
      %368 = vxpose.xlu0.b32.cont [2/16] %v364, 128
      %369 = vxpose.xlu0.b32.cont [3/16] 0.0, 128
      %370 = vxpose.xlu0.b32.cont [4/16] 0.0, 128
      %371 = vxpose.xlu0.b32.cont [5/16] 0.0, 128
      %372 = vxpose.xlu0.b32.cont [6/16] 0.0, 128
      %373 = vxpose.xlu0.b32.cont [7/16] 0.0, 128
      %374 = vxpose.xlu0.b32.cont [8/16] 0.0, 128
      %375 = vxpose.xlu0.b32.cont [9/16] 0.0, 128
      %376 = vxpose.xlu0.b32.cont [10/16] 0.0, 128
      %377 = vxpose.xlu0.b32.cont [11/16] 0.0, 128
      %378 = vxpose.xlu0.b32.cont [12/16] 0.0, 128
      %379 = vxpose.xlu0.b32.cont [13/16] 0.0, 128
      %380 = vxpose.xlu0.b32.cont [14/16] 0.0, 128
      %381 = vxpose.xlu0.b32.cont [15/16] 0.0, 128
      %382 = vxpose.xlu0.b32.end [16/16] 0.0, 128
      %v383 = vpop.trf.xlu0
      %v384 = vpop.trf.xlu0
      %v385 = vpop.trf.xlu0
      %v386 = vpop.trf.xlu0
      %v387 = vpop.trf.xlu0
      %v388 = vpop.trf.xlu0
      %v389 = vpop.trf.xlu0
      %v390 = vpop.trf.xlu0
      %v391 = vpop.trf.xlu0
      %v392 = vpop.trf.xlu0
      %v393 = vpop.trf.xlu0
      %v394 = vpop.trf.xlu0
      %v395 = vpop.trf.xlu0
      %v396 = vpop.trf.xlu0
      %v397 = vpop.trf.xlu0
      %v398 = vpop.trf.xlu0
      %400 = vrot.lane.b32.xlu0 %v352, 112
      %v401 = vpop.permute.xlu0 %400
      %vm403 = vcmask 130048
      %v405 = vsel %vm403, %v383, 0
      %v408 = vsel %vm403, %v384, 0
      %410 = vmatpush.msra.mxu0 0.0
      %411 = vmatpush.msra.mxu0 0.0
      %412 = vmatpush.msra.mxu0 0.0
      %413 = vmatpush.msra.mxu0 0.0
      %414 = vmatpush.msra.mxu0 0.0
      %415 = vmatpush.msra.mxu0 0.0
      %416 = vmatpush.msra.mxu0 0.0
      %417 = vmatpush.msra.mxu0 0.0
      %418 = vmatpush.msra.mxu0 0.0
      %419 = vmatpush.msra.mxu0 0.0
      %420 = vmatpush.msra.mxu0 0.0
      %421 = vmatpush.msra.mxu0 0.0
      %422 = vmatpush.msra.mxu0 0.0
      %423 = vmatpush.msra.mxu0 0.0
      %424 = vmatpush.msra.mxu0 %v362
      %425 = vmatpush.msra.mxu0 %v401
      %426 = vmatmul.f32.gmra.mxu0 %v405
      %v427 = vpop.f32.mrf.mxu0
      %v428 = vadd.f32 0.0, %v427
      %429 = vmatmul.f32.gmra.mxu0 %v408
      %v430 = vpop.f32.mrf.mxu0
      %v431 = vadd.f32 0.0, %v430
      %432 = vdwg.mxu0
      %v433 = vsel %vm403, %v428, -inf
      %434 = vmax.xlane.f32.xlu0 %v433
      %v435 = vpop.xlane.xlu0 %434
      %v436 = vsel %vm403, %v431, -inf
      %437 = vmax.xlane.f32.xlu0 %v436
      %v438 = vpop.xlane.xlu0 %437
      %v439 = vsub.f32 %v428, %v435
      %v440 = vsub.f32 %v431, %v438
      %v441 = vmul.f32 %v439, 1.442695
      %v442 = vpow.pop %v441
      %v443 = vmul.f32 %v440, 1.442695
      %v444 = vpow.pop %v443
      %v445 = vsel %vm403, %v442, 0.0
      %446 = vadd.xlane.f32.xlu0 %v445
      %v447 = vpop.xlane.xlu0 %446
      %v448 = vsel %vm403, %v444, 0.0
      %449 = vadd.xlane.f32.xlu0 %v448
      %v450 = vpop.xlane.xlu0 %449
      %v451 = vrcp.pop %v447
      %v452 = vrcp.pop %v450
      %v453 = vmul.f32 %v442, %v451
      %v454 = vmul.f32 %v444, %v452
      %456 = vrot.lane.b32.xlu0 %v354, 112
      %v457 = vpop.permute.xlu0 %456
      %v458 = vsel %vm403, %v457, 0
      %v461 = vsel %vm403, %v453, 0
      %v464 = vsel %vm403, %v454, 0
      %466 = vmatpush.xpose.msra.mxu0 0.0
      %467 = vmatpush.xpose.msra.mxu0 0.0
      %468 = vmatpush.xpose.msra.mxu0 0.0
      %469 = vmatpush.xpose.msra.mxu0 0.0
      %470 = vmatpush.xpose.msra.mxu0 0.0
      %471 = vmatpush.xpose.msra.mxu0 0.0
      %472 = vmatpush.xpose.msra.mxu0 0.0
      %473 = vmatpush.xpose.msra.mxu0 0.0
      %474 = vmatpush.xpose.msra.mxu0 0.0
      %475 = vmatpush.xpose.msra.mxu0 0.0
      %476 = vmatpush.xpose.msra.mxu0 0.0
      %477 = vmatpush.xpose.msra.mxu0 0.0
      %478 = vmatpush.xpose.msra.mxu0 0.0
      %479 = vmatpush.xpose.msra.mxu0 0.0
      %480 = vmatpush.xpose.msra.mxu0 %v464
      %481 = vmatpush.xpose.msra.mxu0 %v461
      %482 = vmatmul.f32.gmra.mxu0 %v458
      %v483 = vpop.f32.mrf.mxu0
      %v484 = vadd.f32 0.0, %v483
      %485 = vdwg.mxu0
      %487 = vrot.lane.b32.xlu0 %v484, 16
      %v488 = vpop.permute.xlu0 %487
      %s490 = scalar_lea.vmem [#allocation3], %s346
      %vm491 = vcmask 261248
      %492 = vst.msk [vmem:[%s490] sm:$0xff] %vm491, %v488
    $region29: #{tpu_custom_call.1} parent=1 // loop_footer
      %s345 = sadd.s32 1, %s341
    $region30: #{tpu_custom_call.1} parent=1 // loop_footer_branch
      %340 = sbr.rel target = $region26
    $region31: #{tpu_custom_call.1} parent=1 // loop_exit
      _
    // Predicated region
    $region32: #{tpu_custom_call.1} parent=1 // pred_check
      _
    $region33: #{tpu_custom_call.1} parent=1 // pred_check_branch
      %494 = sbr.rel (0) target = $region35
    $region34: #{tpu_custom_call.1} parent=1 // pred_region
      %496 = vsyncadd [#allocation4], 0
      %s497 = sshll.u32 [#allocation3], 4
      %s498 = int_to_ptr.vmem [resolvable:$true] %s497
      %s499 = sshll.u32 %s4, 4
      %s500 = int_to_ptr.hbm [resolvable:$true] %s499
      %505 = dma.vmem_to_hbm [thread:$0]  %s498, 512, %s500, [#allocation4], 128, 128, 8
    $region35: #{tpu_custom_call.1} parent=1 // pred_fallthru
      _
    // Predicated region
    $region36: #{tpu_custom_call.1} parent=1 // pred_check
      _
    $region37: #{tpu_custom_call.1} parent=1 // pred_check_branch
      %507 = sbr.rel (0) target = $region39
    $region38: #{tpu_custom_call.1} parent=1 // pred_region
      %509 = dma.done [#allocation4], 512
    $region39: #{tpu_custom_call.1} parent=1 // pred_fallthru
      _
    %510 = vsyncpa [#allocation4], 1

</llo_original>
